<compile_context>
chip_gen: v7x
topology: tpu7x:2x2x1
jax: 0.10.0
libtpu: 0.0.40
codegen_flags: <defaults>
</compile_context>

<pallas_src>
import functools

import jax
import jax.numpy as jnp
from jax.experimental import pallas as pl
from jax.experimental.pallas import tpu as pltpu

_TARGET_BLOCK_BYTES = 8 << 20  # ~8 MiB of input per block keeps the HBM pipe full


def _layernorm_kernel(x_ref, a_ref, b_ref, o_ref, *, eps, features):
    # x_ref: (rows_blk, F); a_ref/b_ref: (1, F); o_ref: (rows_blk, F)
    x = x_ref[...].astype(jnp.float32)

    # One-pass moments: the two cross-lane (XLU) reductions are independent, so they
    # pipeline instead of forming a reduce -> subtract -> square -> reduce chain.
    sum_x = jnp.sum(x, axis=-1, keepdims=True)
    sum_x2 = jnp.sum(x * x, axis=-1, keepdims=True)
    inv_f = jnp.float32(1.0 / features)
    mean = sum_x * inv_f

    # torch.std defaults to the unbiased estimator (ddof=1).
    # NOTE: features == 1 yields NaN, same as torch.std over a single element.
    var = (sum_x2 - sum_x * mean) * jnp.float32(1.0 / max(features - 1, 1e-30))
    var = jnp.maximum(var, jnp.float32(0.0))  # guard f32 cancellation
    denom = jnp.sqrt(var) + jnp.float32(eps)

    # EUP approximate reciprocal + one Newton-Raphson step (error ~ approx_err^2,
    # i.e. well below f32 eps) on the per-row (rows_blk, 1) column.
    inv0 = pl.reciprocal(denom, approx=True)
    inv = inv0 * (jnp.float32(2.0) - denom * inv0)

    a = a_ref[...].astype(jnp.float32)
    b = b_ref[...].astype(jnp.float32)
    o_ref[...] = (a * ((x - mean) * inv) + b).astype(o_ref.dtype)


def _vmem_capacity_bytes():
    """Per-TensorCore VMEM in bytes, with per-generation fallbacks."""
    kind = ""
    try:
        kind = jax.devices()[0].device_kind.lower()
    except Exception:
        pass
    is_v7 = "v7" in kind

    cap = None
    try:
        info = pltpu.get_tpu_info()
        cap = getattr(info, "vmem_capacity_bytes", None)
    except Exception:
        cap = None

    if not cap:
        # v5e/v6e: 128 MiB per (single) TC; v7x: 64 MiB per TC.
        cap = (64 << 20) if is_v7 else (128 << 20)
    cap = int(cap)

    # If the query reports a chip-level total on v7x (2 TCs), clamp to the per-core
    # 64 MiB figure so tile sizing / vmem_limit stay within physical per-TC VMEM.
    if is_v7:
        cap = min(cap, 64 << 20)
    return min(cap, 128 << 20)


def _pick_rows_block(rows, features, dtype_bytes, vmem_bytes):
    """Bytes-targeted row tile that fits the per-generation VMEM budget."""
    # Sublane granularity: 8 rows for 32-bit, 16 for 16-bit, 32 for 8-bit dtypes.
    sublane = max(8, 32 // max(dtype_bytes, 1))
    if rows <= sublane:
        return rows  # single tiny block; block_shape == full dim is always legal

    # Per-row VMEM cost of one block:
    #   input block  (double-buffered): 2 * F * dtype_bytes
    #   output block (double-buffered): 2 * F * dtype_bytes
    #   f32 working set inside the kernel: ~3 * F * 4
    per_row_vmem = features * (4 * dtype_bytes + 12)
    budget_rows = int(vmem_bytes * 0.4) // max(per_row_vmem, 1)

    # Bytes-based cap (replaces the old fixed 1024-row cap): aim for ~8 MiB of input
    # per block so narrow-F shapes still amortize the ~0.35 us per-grid-step overhead.
    target_rows = _TARGET_BLOCK_BYTES // max(features * dtype_bytes, 1)

    rb = min(budget_rows, target_rows)

    # Keep >= 2 grid blocks so the "parallel" row axis can shard across both
    # TensorCores on v7x (one extra grid step on single-TC v5e/v6e is negligible).
    half = pl.cdiv(pl.cdiv(rows, 2), sublane) * sublane
    rb = min(rb, half)

    rb = max(sublane, (rb // sublane) * sublane)
    if rb >= rows:
        return rows
    return rb


def layer_norm(x, a_2, b_2, eps=1e-6, rows_block=None):
    """x: (..., F); a_2, b_2: (F,).
    Matches the torch module: a_2 * (x - mean) / (std(ddof=1) + eps) + b_2."""
    orig_shape = x.shape
    F = orig_shape[-1]
    x2 = x.reshape(-1, F)          # free reshape, no HBM copy
    rows = x2.shape[0]
    dtype_bytes = jnp.dtype(x.dtype).itemsize

    vmem_bytes = _vmem_capacity_bytes()
    if rows_block is None:
        rows_block = _pick_rows_block(rows, F, dtype_bytes, vmem_bytes)

    a2 = a_2.reshape(1, F)
    b2 = b_2.reshape(1, F)

    kernel = functools.partial(_layernorm_kernel, eps=eps, features=F)
    num_blocks = pl.cdiv(rows, rows_block)   # partial tail block is masked by Pallas

    # Small-block regime only: deepen input pipelining to hide per-step DMA issue
    # latency. Multi-MiB blocks keep the default double-buffering.
    block_in_bytes = rows_block * F * dtype_bytes
    if num_blocks >= 4 and block_in_bytes < (2 << 20):
        x_spec = pl.BlockSpec((rows_block, F), lambda i: (i, 0),
                              pipeline_mode=pl.Buffered(3))
    else:
        x_spec = pl.BlockSpec((rows_block, F), lambda i: (i, 0))

    out = pl.pallas_call(
        kernel,
        out_shape=jax.ShapeDtypeStruct((rows, F), x.dtype),
        grid_spec=pl.GridSpec(
            grid=(num_blocks,),
            in_specs=[
                x_spec,
                pl.BlockSpec((1, F), lambda i: (0, 0)),
                pl.BlockSpec((1, F), lambda i: (0, 0)),
            ],
            out_specs=pl.BlockSpec((rows_block, F), lambda i: (i, 0)),
        ),
        compiler_params=pltpu.CompilerParams(
            # Rows are independent; with >= 2 blocks this shards across the 2 TCs on v7x.
            dimension_semantics=("parallel",),
            # Unlock large double-buffered tiles (v5e's default scoped VMEM is only 16 MiB).
            vmem_limit_bytes=int(vmem_bytes * 0.75),
        ),
    )(x2, a2, b2)

    return out.reshape(orig_shape)


if __name__ == "__main__":
    key = jax.random.PRNGKey(0)
    B, S, F = 2, 8, 32  # batch=2, seq=8, hidden(features)=32

    x = jax.random.normal(key, (B, S, F), dtype=jnp.float32)
    # deterministic parameter init matching nn.Parameter(torch.ones / torch.zeros)
    a_2 = jnp.ones((F,), dtype=jnp.float32)
    b_2 = jnp.zeros((F,), dtype=jnp.float32)

    y = layer_norm(x, a_2, b_2, eps=1e-6)
    y = jax.block_until_ready(y)

    # reference in plain JAX (same unbiased-std semantics as the torch module)
    mean = jnp.mean(x, axis=-1, keepdims=True)
    std = jnp.std(x, axis=-1, keepdims=True, ddof=1)
    ref = a_2 * (x - mean) / (std + 1e-6) + b_2
    assert jnp.allclose(y, ref, atol=1e-5, rtol=1e-5), "mismatch vs reference"

    print("KERNEL_OK")
</pallas_src>

<mosaic_0001>
module attributes {stable_mosaic.version = 11 : i64} {
  func.func @_layernorm_kernel(%arg0: i32, %arg1: memref<8x32xf32, #tpu.memory_space<vmem>>, %arg2: memref<1x32xf32, #tpu.memory_space<vmem>>, %arg3: memref<1x32xf32, #tpu.memory_space<vmem>>, %arg4: memref<8x32xf32, #tpu.memory_space<vmem>>) attributes {dimension_semantics = [#tpu.dimension_semantics<parallel>], iteration_bounds = array<i64: 2>, scalar_prefetch = 0 : i64, scratch_operands = 0 : i64, tpu.core_type = #tpu.core_type<tc>, window_params = [{transform_indices = @transform_0, window_bounds = array<i64: 8, 32>}, {pipeline_mode = #tpu.pipeline_mode<synchronous>, transform_indices = @transform_1, window_bounds = array<i64: 1, 32>}, {pipeline_mode = #tpu.pipeline_mode<synchronous>, transform_indices = @transform_2, window_bounds = array<i64: 1, 32>}, {transform_indices = @transform_3, window_bounds = array<i64: 8, 32>}]} {
    %c0 = arith.constant 0 : index
    %c0_0 = arith.constant 0 : index
    %0 = vector.load %arg1[%c0, %c0_0] : memref<8x32xf32, #tpu.memory_space<vmem>>, vector<8x32xf32>
    %cst = arith.constant dense<0.000000e+00> : vector<8xf32>
    %1 = vector.multi_reduction <add>, %0, %cst [1] : vector<8x32xf32> to vector<8xf32>
    %2 = vector.shape_cast %1 : vector<8xf32> to vector<8x1xf32>
    %3 = arith.mulf %0, %0 : vector<8x32xf32>
    %cst_1 = arith.constant dense<0.000000e+00> : vector<8xf32>
    %4 = vector.multi_reduction <add>, %3, %cst_1 [1] : vector<8x32xf32> to vector<8xf32>
    %5 = vector.shape_cast %4 : vector<8xf32> to vector<8x1xf32>
    %cst_2 = arith.constant 3.125000e-02 : f32
    %6 = vector.broadcast %cst_2 : f32 to vector<8x1xf32>
    %7 = arith.mulf %2, %6 : vector<8x1xf32>
    %8 = arith.mulf %2, %7 : vector<8x1xf32>
    %9 = arith.subf %5, %8 : vector<8x1xf32>
    %cst_3 = arith.constant 0.0322580636 : f32
    %10 = vector.broadcast %cst_3 : f32 to vector<8x1xf32>
    %11 = arith.mulf %9, %10 : vector<8x1xf32>
    %cst_4 = arith.constant 0.000000e+00 : f32
    %12 = vector.broadcast %cst_4 : f32 to vector<8x1xf32>
    %13 = arith.maximumf %11, %12 : vector<8x1xf32>
    %14 = math.sqrt %13 : vector<8x1xf32>
    %cst_5 = arith.constant 9.99999997E-7 : f32
    %15 = vector.broadcast %cst_5 : f32 to vector<8x1xf32>
    %16 = arith.addf %14, %15 : vector<8x1xf32>
    %17 = tpu.reciprocal %16 {approx = true} : vector<8x1xf32> -> vector<8x1xf32>
    %18 = arith.mulf %16, %17 : vector<8x1xf32>
    %cst_6 = arith.constant 2.000000e+00 : f32
    %19 = vector.broadcast %cst_6 : f32 to vector<8x1xf32>
    %20 = arith.subf %19, %18 : vector<8x1xf32>
    %21 = arith.mulf %17, %20 : vector<8x1xf32>
    %c0_7 = arith.constant 0 : index
    %c0_8 = arith.constant 0 : index
    %22 = vector.load %arg2[%c0_7, %c0_8] : memref<1x32xf32, #tpu.memory_space<vmem>>, vector<1x32xf32>
    %c0_9 = arith.constant 0 : index
    %c0_10 = arith.constant 0 : index
    %23 = vector.load %arg3[%c0_9, %c0_10] : memref<1x32xf32, #tpu.memory_space<vmem>>, vector<1x32xf32>
    %24 = vector.broadcast %7 : vector<8x1xf32> to vector<8x32xf32>
    %25 = arith.subf %0, %24 : vector<8x32xf32>
    %26 = vector.broadcast %21 : vector<8x1xf32> to vector<8x32xf32>
    %27 = arith.mulf %25, %26 : vector<8x32xf32>
    %28 = vector.broadcast %22 : vector<1x32xf32> to vector<8x32xf32>
    %29 = arith.mulf %28, %27 : vector<8x32xf32>
    %30 = vector.broadcast %23 : vector<1x32xf32> to vector<8x32xf32>
    %31 = arith.addf %29, %30 : vector<8x32xf32>
    %c0_11 = arith.constant 0 : index
    %c0_12 = arith.constant 0 : index
    %32 = vector.load %arg4[%c0_11, %c0_12] : memref<8x32xf32, #tpu.memory_space<vmem>>, vector<8x32xf32>
    tpu.vector_store %arg4[%c0_11, %c0_12], %31 {strides = array<i32>} : memref<8x32xf32, #tpu.memory_space<vmem>>, vector<8x32xf32>,
    return
  }
  func.func @transform_0(%arg0: i32) -> (i32, i32) {
    %c0_i32 = arith.constant 0 : i32
    %c0_i32_0 = arith.constant 0 : i32
    return %arg0, %c0_i32 : i32, i32
  }
  func.func @transform_1(%arg0: i32) -> (i32, i32) {
    %c0_i32 = arith.constant 0 : i32
    %c0_i32_0 = arith.constant 0 : i32
    %c0_i32_1 = arith.constant 0 : i32
    return %c0_i32, %c0_i32_0 : i32, i32
  }
  func.func @transform_2(%arg0: i32) -> (i32, i32) {
    %c0_i32 = arith.constant 0 : i32
    %c0_i32_0 = arith.constant 0 : i32
    %c0_i32_1 = arith.constant 0 : i32
    return %c0_i32, %c0_i32_0 : i32, i32
  }
  func.func @transform_3(%arg0: i32) -> (i32, i32) {
    %c0_i32 = arith.constant 0 : i32
    %c0_i32_0 = arith.constant 0 : i32
    return %arg0, %c0_i32 : i32, i32
  }
}

</mosaic_0001>

<llo_original>
// kernel: tpu_custom_call.1
$region0: #{tpu_custom_call.1}
  #allocation0 [shape = 'u32[]', space=smem, size = 0x4, offset = 0x4, fixed_abs, tag = 'smem constant byte address 0x4 - core index']
  #allocation1 [shape = 'u32[144,128]{1,0:T(1,128)}', space=vmem, size = 0x12000, scoped, tag = 'internal scratch']
  %s0 = inlined_call_operand.hbm [shape: f32[16,32], index: 0, kind: input, shape index: {}]
  %s1 = inlined_call_operand.hbm [shape: f32[1,32], index: 1, kind: input, shape index: {}]
  %s2 = inlined_call_operand.hbm [shape: f32[1,32], index: 2, kind: input, shape index: {}]
  %s3 = inlined_call_operand.hbm [shape: f32[16,32], index: 3, kind: output, shape index: {}]
  %s4 = sld [smem:[#allocation0]]
  $region57: #{tpu_custom_call.1} parent=0
    _
  %s6 = ssub.s32 1, %s4
  %s7 = scalar_select 0, %s6, %s4
  $region1: #{tpu_custom_call.1} parent=0
    #allocation2 [shape = 'u8[8192]{0}', space=vmem, size = 0x2000, scoped, tag = 'input window, operand 0']
    #allocation3 [shape = 's32[2]{0}', space=sflag, size = 0x8, scoped, tag = 'scoped memory for tpu_custom_call.1']
    #allocation4 [shape = 's32[2]{0}', space=sflag, size = 0x8, scoped, tag = 'scoped memory for tpu_custom_call.1']
    #allocation5 [shape = 'u8[512]{0}', space=vmem, size = 0x400, scoped, tag = 'input window, operand 1, single buffered']
    #allocation6 [shape = 's32[1]{0}', space=sflag, size = 0x4, scoped, tag = 'scoped memory for tpu_custom_call.1']
    #allocation7 [shape = 'u8[512]{0}', space=vmem, size = 0x400, scoped, tag = 'input window, operand 2, single buffered']
    #allocation8 [shape = 'u8[8192]{0}', space=vmem, size = 0x2000, scoped, tag = 'output window, operand 0']
    %8 = vsyncpa [#allocation3], 0
    %s9 = scalar_lea.sflag [#allocation3], 1
    %10 = vsyncpa %s9, 0
    %11 = vsyncpa [#allocation6], 0
    %12 = vsyncpa [#allocation4], 0
    %s13 = scalar_lea.sflag [#allocation4], 1
    %14 = vsyncpa %s13, 0
    loop: start=0, step=1, limit=4
    $region2: #{tpu_custom_call.1} parent=1 // loop_pre_header
      _
    $region3: #{tpu_custom_call.1} parent=1 // loop_header
      %s16 = sphi 0, %s20
      %p17 = scmp.ge.s32.totalorder %s16, 4
      %s26 = sphi 0, %s28
      %s29 = sphi 0, %s26
      %s30 = sphi 0, %s29
      %s46 = sphi 0, %s30
      %s50 = sphi 0, %s50
      %s52 = sphi 0, %s50
      %s53 = sphi 0, %s52
      %s67 = sphi 0, %s53
      %s71 = sphi 0, %s71
      %s73 = sphi 0, %s71
      %s74 = sphi 0, %s73
      %s88 = sphi 0, %s74
      %s94 = sphi 0, %s96
      %s97 = sphi 0, %s94
      %s98 = sphi 0, %s97
      %s114 = sphi 0, %s98
    $region4: #{tpu_custom_call.1} parent=1 // loop_header_branch
      %19 = sbr.rel (%p17) target = $region8
    $region5: #{tpu_custom_call.1} parent=1 // loop_body
      %s21 = ssub.s32 %s16, 1
      %s22 = ssub.s32 %s16, 2
      %s23 = sadd.s32 %s16, 1
      %s24 = ssub.s32 %s16, %s23
      %p25 = scmp.eq.s32.totalorder %s24, 0
      %s27 = sadd.s32 %s26, 1
      %s28 = scalar_select %p25, %s26, %s27
      %p31 = pneg %p25
      %p32 = scmp.eq.s32.totalorder %s16, 1
      %p33 = por %p31, %p32
      %p34 = scmp.ne.s32.totalorder %s26, %s29
      %p35 = scmp.eq.s32.totalorder %s16, 0
      %p36 = por %p34, %p35
      %p37 = scmp.ne.s32.totalorder %s26, %s29
      %p38 = scmp.eq.s32.totalorder %s21, 1
      %p39 = por %p37, %p38
      %p40 = scmp.ne.s32.totalorder %s29, %s30
      %p41 = scmp.eq.s32.totalorder %s21, 0
      %p42 = por %p40, %p41
      %p43 = scmp.ne.s32.totalorder %s29, %s30
      %p44 = scmp.eq.s32.totalorder %s22, 1
      %p45 = por %p43, %p44
      %p47 = scmp.ne.s32.totalorder %s30, %s46
      %p48 = scmp.eq.s32.totalorder %s22, 0
      %p49 = por %p47, %p48
      %s51 = sadd.s32 %s50, 1
      %p54 = scmp.eq.s32.totalorder %s16, 1
      %p55 = scmp.ne.s32.totalorder %s50, %s52
      %p56 = scmp.eq.s32.totalorder %s16, 0
      %p57 = por %p55, %p56
      %p58 = scmp.ne.s32.totalorder %s50, %s52
      %p59 = scmp.eq.s32.totalorder %s21, 1
      %p60 = por %p58, %p59
      %p61 = scmp.ne.s32.totalorder %s52, %s53
      %p62 = scmp.eq.s32.totalorder %s21, 0
      %p63 = por %p61, %p62
      %p64 = scmp.ne.s32.totalorder %s52, %s53
      %p65 = scmp.eq.s32.totalorder %s22, 1
      %p66 = por %p64, %p65
      %p68 = scmp.ne.s32.totalorder %s53, %s67
      %p69 = scmp.eq.s32.totalorder %s22, 0
      %p70 = por %p68, %p69
      %s72 = sadd.s32 %s71, 1
      %p75 = scmp.eq.s32.totalorder %s16, 1
      %p76 = scmp.ne.s32.totalorder %s71, %s73
      %p77 = scmp.eq.s32.totalorder %s16, 0
      %p78 = por %p76, %p77
      %p79 = scmp.ne.s32.totalorder %s71, %s73
      %p80 = scmp.eq.s32.totalorder %s21, 1
      %p81 = por %p79, %p80
      %p82 = scmp.ne.s32.totalorder %s73, %s74
      %p83 = scmp.eq.s32.totalorder %s21, 0
      %p84 = por %p82, %p83
      %p85 = scmp.ne.s32.totalorder %s73, %s74
      %p86 = scmp.eq.s32.totalorder %s22, 1
      %p87 = por %p85, %p86
      %p89 = scmp.ne.s32.totalorder %s74, %s88
      %p90 = scmp.eq.s32.totalorder %s22, 0
      %p91 = por %p89, %p90
      %s92 = ssub.s32 %s16, %s23
      %p93 = scmp.eq.s32.totalorder %s92, 0
      %s95 = sadd.s32 %s94, 1
      %s96 = scalar_select %p93, %s94, %s95
      %p99 = pneg %p93
      %p100 = scmp.eq.s32.totalorder %s16, 1
      %p101 = por %p99, %p100
      %p102 = scmp.ne.s32.totalorder %s94, %s97
      %p103 = scmp.eq.s32.totalorder %s16, 0
      %p104 = por %p102, %p103
      %p105 = scmp.ne.s32.totalorder %s94, %s97
      %p106 = scmp.eq.s32.totalorder %s21, 1
      %p107 = por %p105, %p106
      %p108 = scmp.ne.s32.totalorder %s97, %s98
      %p109 = scmp.eq.s32.totalorder %s21, 0
      %p110 = por %p108, %p109
      %p111 = scmp.ne.s32.totalorder %s97, %s98
      %p112 = scmp.eq.s32.totalorder %s22, 1
      %p113 = por %p111, %p112
      %p115 = scmp.ne.s32.totalorder %s98, %s114
      %p116 = scmp.eq.s32.totalorder %s22, 0
      %p117 = por %p115, %p116
      %p118 = scmp.le.s32.totalorder 1, %s16
      %p119 = scmp.lt.s32.totalorder %s16, 3
      %p120 = pnand %p118, %p119
      %p121 = pneg %p120
      // Predicated region
      $region9: #{tpu_custom_call.1} parent=5 // pred_check
        _
      $region10: #{tpu_custom_call.1} parent=5 // pred_check_branch
        %123 = sbr.rel (%p120) target = $region12
      $region11: #{tpu_custom_call.1} parent=5 // pred_region
        %s124 = ssub.s32 %s16, 1
        // Predicated region
        $region13: #{tpu_custom_call.1} parent=11 // pred_check
          %p125 = pneg %p63
        $region14: #{tpu_custom_call.1} parent=11 // pred_check_branch
          %127 = sbr.rel (%p125) target = $region16
        $region15: #{tpu_custom_call.1} parent=11 // pred_region
          %s129 = ssub.s32 16, 16
          %130 = vsyncadd [#allocation6], %s129
          %s132 = sshll.u32 [#allocation5], 4
          %s133 = int_to_ptr.vmem [resolvable:$true] %s132
          %135 = dma.hbm_to_vmem [thread:$0]  %s1, 16, %s133, [#allocation6]
        $region16: #{tpu_custom_call.1} parent=11 // pred_fallthru
          _
        // Predicated region
        $region17: #{tpu_custom_call.1} parent=11 // pred_check
          %p136 = pneg %p84
        $region18: #{tpu_custom_call.1} parent=11 // pred_check_branch
          %138 = sbr.rel (%p136) target = $region20
        $region19: #{tpu_custom_call.1} parent=11 // pred_region
          %s140 = ssub.s32 16, 16
          %141 = vsyncadd [#allocation6], %s140
          %s143 = sshll.u32 [#allocation7], 4
          %s144 = int_to_ptr.vmem [resolvable:$true] %s143
          %146 = dma.hbm_to_vmem [thread:$0]  %s2, 16, %s144, [#allocation6]
        $region20: #{tpu_custom_call.1} parent=11 // pred_fallthru
          _
      $region12: #{tpu_custom_call.1} parent=5 // pred_fallthru
        _
      %p147 = scmp.lt.s32.totalorder %s16, 2
      // Predicated region
      $region21: #{tpu_custom_call.1} parent=5 // pred_check
        %p148 = pneg %p147
      $region22: #{tpu_custom_call.1} parent=5 // pred_check_branch
        %150 = sbr.rel (%p148) target = $region24
      $region23: #{tpu_custom_call.1} parent=5 // pred_region
        // Predicated region
        $region25: #{tpu_custom_call.1} parent=23 // pred_check
          %p151 = pneg %p36
        $region26: #{tpu_custom_call.1} parent=23 // pred_check_branch
          %153 = sbr.rel (%p151) target = $region28
        $region27: #{tpu_custom_call.1} parent=23 // pred_region
          %s154 = sand.u32 %s26, 1
          %s155 = scalar_lea.sflag [#allocation3], %s154
          %s156 = sand.u32 %s26, 1
          %s157 = smul.addr %s156, 8
          %s158 = scalar_lea.vmem [#allocation2], %s157
          %s160 = ssub.s32 128, 128
          %161 = vsyncadd %s155, %s160
          %s162 = smul.addr %s16, 128
          %s163 = scalar_lea.hbm %s0, %s162
          %s165 = sshll.u32 %s158, 4
          %s166 = int_to_ptr.vmem [resolvable:$true] %s165
          %168 = dma.hbm_to_vmem [thread:$0]  %s163, 128, %s166, %s155
        $region28: #{tpu_custom_call.1} parent=23 // pred_fallthru
          _
      $region24: #{tpu_custom_call.1} parent=5 // pred_fallthru
        _
      %p169 = scmp.le.s32.totalorder 1, %s16
      %p170 = scmp.lt.s32.totalorder %s16, 3
      %p171 = pnand %p169, %p170
      %p172 = pneg %p171
      // Predicated region
      $region29: #{tpu_custom_call.1} parent=5 // pred_check
        _
      $region30: #{tpu_custom_call.1} parent=5 // pred_check_branch
        %174 = sbr.rel (%p171) target = $region32
      $region31: #{tpu_custom_call.1} parent=5 // pred_region
        %s175 = ssub.s32 %s16, 1
        %s176 = sand.u32 %s29, 1
        %s177 = scalar_lea.sflag [#allocation3], %s176
        %s178 = sand.u32 %s29, 1
        %s179 = smul.addr %s178, 8
        %s180 = scalar_lea.vmem [#allocation2], %s179
        // Predicated region
        $region33: #{tpu_custom_call.1} parent=31 // pred_check
          %p181 = pneg %p42
        $region34: #{tpu_custom_call.1} parent=31 // pred_check_branch
          %183 = sbr.rel (%p181) target = $region36
        $region35: #{tpu_custom_call.1} parent=31 // pred_region
          %184 = dma.done %s177, 128
        $region36: #{tpu_custom_call.1} parent=31 // pred_fallthru
          _
        // Predicated region
        $region37: #{tpu_custom_call.1} parent=31 // pred_check
          %p185 = pneg %p63
        $region38: #{tpu_custom_call.1} parent=31 // pred_check_branch
          %187 = sbr.rel (%p185) target = $region40
        $region39: #{tpu_custom_call.1} parent=31 // pred_region
          %188 = dma.done [#allocation6], 16
        $region40: #{tpu_custom_call.1} parent=31 // pred_fallthru
          _
        // Predicated region
        $region41: #{tpu_custom_call.1} parent=31 // pred_check
          %p189 = pneg %p84
        $region42: #{tpu_custom_call.1} parent=31 // pred_check_branch
          %191 = sbr.rel (%p189) target = $region44
        $region43: #{tpu_custom_call.1} parent=31 // pred_region
          %192 = dma.done [#allocation6], 16
        $region44: #{tpu_custom_call.1} parent=31 // pred_fallthru
          _
        %s193 = sand.u32 %s29, 1
        %s194 = scalar_lea.sflag [#allocation3], %s193
        %s195 = sand.u32 %s29, 1
        %s196 = smul.addr %s195, 8
        %s197 = scalar_lea.vmem [#allocation2], %s196
        %p198 = pneg %p42
        %p199 = pneg %p39
        %p200 = pneg %p63
        %p201 = pneg %p60
        %p202 = pneg %p84
        %p203 = pneg %p81
        %p204 = pneg %p110
        %p205 = pneg %p107
        %s206 = sand.u32 %s97, 1
        %s207 = scalar_lea.sflag [#allocation4], %s206
        %s208 = sand.u32 %s97, 1
        %s209 = smul.addr %s208, 8
        %s210 = scalar_lea.vmem [#allocation8], %s209
        %v211 = vld [vmem:[%s180] sm:$0xff]
        %vm212 = vcmask 261120
        %v213 = vsel %vm212, %v211, 0.0
        %214 = vadd.xlane.f32.xlu0 %v213
        %v215 = vpop.xlane.xlu0 %214
        %v216 = vmul.f32 %v211, %v211
        %v217 = vsel %vm212, %v216, 0.0
        %218 = vadd.xlane.f32.xlu0 %v217
        %v219 = vpop.xlane.xlu0 %218
        %v220 = vmul.f32 %v215, 0.03125
        %v221 = vmul.f32 %v215, %v220
        %v222 = vsub.f32 %v219, %v221
        %v223 = vmul.f32 %v222, 0.032258064
        %v224 = vmax.f32 %v223, 0.0
        %v225 = vrsqrt.pop %v224
        %v226 = vmul.f32 %v224, %v225
        %vm227 = vcmp.eq.f32.partialorder %v224, inf
        %v228 = vsel %vm227, %v224, %v226
        %vm229 = vcmp.eq.f32.partialorder %v224, 0.0
        %v230 = vand.u32 %v224, 2147483648
        %v231 = vsel %vm229, %v230, %v228
        %v232 = vadd.f32 %v231, 1e-06
        %v233 = vrcp.pop %v232
        %v234 = vmul.f32 %v232, %v233
        %v235 = vsub.f32 2.0, %v234
        %v236 = vmul.f32 %v233, %v235
        %v237 = vld [vmem:[#allocation5] sm:$0x1]
        %v238 = vld [vmem:[#allocation7] sm:$0x1]
        %v239 = vsub.f32 %v211, %v220
        %v240 = vmul.f32 %v239, %v236
        %v242 = vlaneseq
        %v243 = vshrl.u32 %v242, 7
        %v244 = vsub.s32 0, %v243
        %v245 = vrot.slane %v237, %v244
        %v247 = vmul.f32 %v245, %v240
        %v249 = vlaneseq
        %v250 = vshrl.u32 %v249, 7
        %v251 = vsub.s32 0, %v250
        %v252 = vrot.slane %v238, %v251
        %v254 = vadd.f32 %v247, %v252
        %255 = vst.msk [vmem:[%s210] sm:$0xff] %vm212, %v254
        %s256 = sand.u32 %s97, 1
        %s257 = scalar_lea.sflag [#allocation4], %s256
        %s258 = sand.u32 %s97, 1
        %s259 = smul.addr %s258, 8
        %s260 = scalar_lea.vmem [#allocation8], %s259
        // Predicated region
        $region45: #{tpu_custom_call.1} parent=31 // pred_check
          %p261 = pneg %p107
        $region46: #{tpu_custom_call.1} parent=31 // pred_check_branch
          %263 = sbr.rel (%p261) target = $region48
        $region47: #{tpu_custom_call.1} parent=31 // pred_region
          %s265 = ssub.s32 128, 128
          %266 = vsyncadd %s257, %s265
          %s267 = smul.addr %s21, 128
          %s268 = scalar_lea.hbm %s3, %s267
          %s270 = sshll.u32 %s260, 4
          %s271 = int_to_ptr.vmem [resolvable:$true] %s270
          %273 = dma.vmem_to_hbm [thread:$0]  %s271, 128, %s268, %s257
        $region48: #{tpu_custom_call.1} parent=31 // pred_fallthru
          _
      $region32: #{tpu_custom_call.1} parent=5 // pred_fallthru
        _
      %p274 = scmp.le.s32.totalorder 2, %s16
      // Predicated region
      $region49: #{tpu_custom_call.1} parent=5 // pred_check
        %p275 = pneg %p274
      $region50: #{tpu_custom_call.1} parent=5 // pred_check_branch
        %277 = sbr.rel (%p275) target = $region52
      $region51: #{tpu_custom_call.1} parent=5 // pred_region
        %s278 = ssub.s32 %s16, 2
        // Predicated region
        $region53: #{tpu_custom_call.1} parent=51 // pred_check
          %p279 = pneg %p113
        $region54: #{tpu_custom_call.1} parent=51 // pred_check_branch
          %281 = sbr.rel (%p279) target = $region56
        $region55: #{tpu_custom_call.1} parent=51 // pred_region
          %s282 = sand.u32 %s98, 1
          %s283 = scalar_lea.sflag [#allocation4], %s282
          %s284 = sand.u32 %s98, 1
          %s285 = smul.addr %s284, 8
          %s286 = scalar_lea.vmem [#allocation8], %s285
          %287 = dma.done %s283, 128
        $region56: #{tpu_custom_call.1} parent=51 // pred_fallthru
          _
      $region52: #{tpu_custom_call.1} parent=5 // pred_fallthru
        _
    $region6: #{tpu_custom_call.1} parent=1 // loop_footer
      %s20 = sadd.s32 1, %s16
    $region7: #{tpu_custom_call.1} parent=1 // loop_footer_branch
      %15 = sbr.rel target = $region3
    $region8: #{tpu_custom_call.1} parent=1 // loop_exit
      _
    %288 = vsyncpa [#allocation3], 1
    %s289 = scalar_lea.sflag [#allocation3], 1
    %290 = vsyncpa %s289, 1
    %291 = vsyncpa [#allocation6], 1
    %292 = vsyncpa [#allocation4], 1
    %s293 = scalar_lea.sflag [#allocation4], 1
    %294 = vsyncpa %s293, 1

</llo_original>
